<compile_context>
chip_gen: v5e
topology: v5e:2x2
jax: 0.10.0
libtpu: 0.0.40
codegen_flags: <defaults>
</compile_context>

<pallas_src>
import functools

import jax
import jax.numpy as jnp
from jax.experimental import pallas as pl
from jax.experimental.pallas import tpu as pltpu


def _prenorm_kernel(x_ref, gamma_ref, beta_ref, w_ref, bias_ref, o_ref,
                    *, inv_d, d_real, d_padded):
    # x_ref: (TM, D_p) tile of flattened tokens (zero-padded feature dim).
    x = x_ref[...].astype(jnp.float32)

    # --- LayerNorm over the real last dim, eps=1e-5, biased variance --------
    # Padded feature columns of x are zero, so sum(x) over the padded width
    # equals the sum over the real width; dividing by the real D (inv_d)
    # reproduces torch.nn.LayerNorm's mean exactly.
    mean = jnp.sum(x, axis=-1, keepdims=True) * inv_d
    xc = x - mean
    if d_real != d_padded:
        # Two-pass variance: padded columns of (x - mean) are -mean, so mask
        # them out of the squared sum (real columns are untouched).
        col = jax.lax.broadcasted_iota(jnp.int32, xc.shape, dimension=1)
        xc = jnp.where(col < d_real, xc, 0.0)
    var = jnp.sum(xc * xc, axis=-1, keepdims=True) * inv_d
    inv = jax.lax.rsqrt(var + 1e-5)
    # Padded gamma/beta are zero -> padded columns of y are exactly zero and
    # contribute nothing to the matmul.
    y = (xc * inv) * gamma_ref[...].astype(jnp.float32) \
        + beta_ref[...].astype(jnp.float32)

    # --- fn: Linear(D -> D_out) fused as a bf16 MXU matmul, f32 accumulate --
    z = jnp.dot(y.astype(jnp.bfloat16), w_ref[...],
                preferred_element_type=jnp.float32)
    z = z + bias_ref[...].astype(jnp.float32)

    o_ref[...] = z.astype(o_ref.dtype)


def _round_up(v, m):
    return (v + m - 1) // m * m


def _cdiv(a, b):
    return -(-a // b)


def _vmem_budget_bytes():
    """Generation-aware usable-VMEM budget (with compiler headroom)."""
    cap = None
    try:
        cap = pltpu.get_tpu_info().vmem_capacity_bytes
    except Exception:
        cap = None
    if cap is None or cap <= 0:
        cap = 128 << 20
    if cap <= (65 << 20):
        # v7x-class: 64 MiB per TensorCore -> keep ~12 MiB headroom.
        return max(32 << 20, min(cap - (12 << 20), 52 << 20))
    # v5e / v6e: 128 MiB -> allow up to ~100 MiB.
    return max(32 << 20, min(cap - (28 << 20), 100 << 20))


def _row_tile_bytes(tm_rows, d_p, tn, x_bytes, o_bytes):
    # Double-buffered x and out tiles + in-kernel f32 temporaries (x/y and z).
    return tm_rows * (2 * d_p * x_bytes + 2 * tn * o_bytes
                      + 2 * d_p * 4 + 2 * tn * 4)


def prenorm_apply(x, gamma, beta, w, bias, *, tm=1024, out_dtype=None):
    """PreNorm(dim, Linear(D, D_out)) forward.

    x: (B, N, D).  Returns (B, N, D_out) in `out_dtype` (defaults to x.dtype;
    pass jnp.bfloat16 to halve output DMA bytes if the consumer tolerates it).
    """
    B, N, D = x.shape
    D_out = w.shape[1]
    R = B * N
    out_dtype = x.dtype if out_dtype is None else out_dtype

    x_bytes = jnp.dtype(x.dtype).itemsize
    o_bytes = jnp.dtype(out_dtype).itemsize

    # Lane-dense feature dims (multiples of 128).
    D_p = _round_up(D, 128)
    D_out_p = _round_up(D_out, 128)

    budget = _vmem_budget_bytes()

    # --- choose the output-column tile TN (weight residency) ---------------
    # Resident bytes assume Pallas' default 2 buffers per BlockSpec (no
    # pipeline_mode override is used, so this is the conservative truth).
    n_cols = 1
    max_cols = max(1, D_out_p // 128)
    while True:
        TN = _round_up(_cdiv(D_out_p, n_cols), 128)
        resident = 2 * D_p * TN * 2 + 2 * (2 * D_p + TN) * 4   # w(bf16)+params
        if (resident + _row_tile_bytes(8, D_p, TN, x_bytes, o_bytes) <= budget
                or n_cols >= max_cols):
            break
        n_cols += 1
    D_out_pp = n_cols * TN

    # --- choose the row tile TM within the remaining budget ----------------
    row_budget = max(budget - resident, 1)
    R_8 = _round_up(R, 8)
    TM = max(8, min(_round_up(tm, 8), R_8))
    while TM > 8 and _row_tile_bytes(TM, D_p, TN, x_bytes, o_bytes) > row_budget:
        TM = max(8, _round_up(TM // 2, 8))

    # Pad rows only to a multiple of 8; pick TM so it divides the padded row
    # count, and force >= 2 row-grid steps when possible (v7x 2-TC sharding).
    g_rows = _cdiv(R_8, TM)
    if R_8 >= 16 and g_rows < 2:
        g_rows = 2
    TM = _round_up(_cdiv(R_8, g_rows), 8)
    R_p = TM * g_rows

    # --- prepare operands (skip pads/copies when not needed) ---------------
    x2 = x.reshape(R, D)
    if R_p != R or D_p != D:
        x2 = jnp.pad(x2, ((0, R_p - R), (0, D_p - D)))

    gamma2 = gamma.astype(jnp.float32)
    beta2 = beta.astype(jnp.float32)
    if D_p != D:
        gamma2 = jnp.pad(gamma2, (0, D_p - D))
        beta2 = jnp.pad(beta2, (0, D_p - D))
    gamma2 = gamma2.reshape(1, D_p)
    beta2 = beta2.reshape(1, D_p)

    w_p = w
    if D_p != D or D_out_pp != D_out:
        w_p = jnp.pad(w_p, ((0, D_p - D), (0, D_out_pp - D_out)))
    w_p = w_p.astype(jnp.bfloat16)

    bias2 = bias.astype(jnp.float32)
    if D_out_pp != D_out:
        bias2 = jnp.pad(bias2, (0, D_out_pp - D_out))
    bias2 = bias2.reshape(1, D_out_pp)

    # --- grid: (column tiles outer, row tiles inner) ------------------------
    # Row axis is innermost so each weight column block stays resident across
    # all row tiles (constant inner index -> no re-DMA).
    grid = (n_cols, g_rows)

    cost = pl.CostEstimate(
        flops=2 * R * D * D_out,
        transcendentals=0,
        bytes_accessed=int(n_cols * R_p * D_p * x_bytes       # x (re-streamed per col tile)
                           + R_p * D_out_pp * o_bytes          # out
                           + D_p * D_out_pp * 2                # weight (resident per col tile)
                           + (2 * D_p + D_out_pp) * 4),        # gamma/beta/bias
    )

    kernel = functools.partial(_prenorm_kernel,
                               inv_d=1.0 / D, d_real=D, d_padded=D_p)

    out2 = pl.pallas_call(
        kernel,
        out_shape=jax.ShapeDtypeStruct((R_p, D_out_pp), out_dtype),
        grid_spec=pltpu.PrefetchScalarGridSpec(
            num_scalar_prefetch=0,
            grid=grid,
            in_specs=[
                pl.BlockSpec((TM, D_p), lambda j, i: (i, 0)),      # x row tile
                pl.BlockSpec((1, D_p), lambda j, i: (0, 0)),       # gamma (resident)
                pl.BlockSpec((1, D_p), lambda j, i: (0, 0)),       # beta  (resident)
                pl.BlockSpec((D_p, TN), lambda j, i: (0, j)),      # weight col tile
                pl.BlockSpec((1, TN), lambda j, i: (0, j)),        # bias  col tile
            ],
            out_specs=pl.BlockSpec((TM, TN), lambda j, i: (i, j)),
        ),
        compiler_params=pltpu.CompilerParams(
            dimension_semantics=("parallel", "parallel"),
            vmem_limit_bytes=int(budget),
        ),
        cost_estimate=cost,
    )(x2, gamma2, beta2, w_p, bias2)

    return out2[:R, :D_out].reshape(B, N, D_out)


def _reference(x, gamma, beta, w, bias):
    xf = x.astype(jnp.float32)
    mean = jnp.mean(xf, axis=-1, keepdims=True)
    var = jnp.mean((xf - mean) ** 2, axis=-1, keepdims=True)
    y = (xf - mean) * jax.lax.rsqrt(var + 1e-5) * gamma + beta
    return jnp.einsum("bnd,de->bne", y, w) + bias


def _make_case(key, B, N, D, D_out):
    k1, k2, k3 = jax.random.split(key, 3)
    x = jax.random.normal(k1, (B, N, D), dtype=jnp.float32)
    gamma = jnp.ones((D,), dtype=jnp.float32)      # torch LayerNorm default init
    beta = jnp.zeros((D,), dtype=jnp.float32)
    w = jax.random.normal(k2, (D, D_out), dtype=jnp.float32) * (1.0 / jnp.sqrt(D))
    bias = jax.random.normal(k3, (D_out,), dtype=jnp.float32) * 0.01
    return x, gamma, beta, w, bias


if __name__ == "__main__":
    key = jax.random.PRNGKey(0)
    ka, kb = jax.random.split(key)

    # Case 1: lane-dense dims (the intended deployment shape class).
    B, N, D, D_out = 2, 8, 128, 128
    x, gamma, beta, w, bias = _make_case(ka, B, N, D, D_out)
    out = jax.block_until_ready(prenorm_apply(x, gamma, beta, w, bias))
    ref = _reference(x, gamma, beta, w, bias)
    assert out.shape == (B, N, D_out)
    # bf16 matmul operands with f32 accumulation -> relaxed tolerance.
    assert jnp.allclose(out, ref, atol=3e-2, rtol=3e-2), "mismatch vs reference (128)"

    # Case 2: small, non-lane-aligned dims + odd row count, exercising both
    # the feature-padding (masked variance) and row-padding paths.
    B, N, D, D_out = 2, 7, 32, 48
    x, gamma, beta, w, bias = _make_case(kb, B, N, D, D_out)
    out = jax.block_until_ready(prenorm_apply(x, gamma, beta, w, bias))
    ref = _reference(x, gamma, beta, w, bias)
    assert out.shape == (B, N, D_out)
    assert jnp.allclose(out, ref, atol=3e-2, rtol=3e-2), "mismatch vs reference (32->48)"

    print("KERNEL_OK")
</pallas_src>

<mosaic_0001>
module attributes {stable_mosaic.version = 11 : i64} {
  func.func @_prenorm_kernel(%arg0: i32, %arg1: i32, %arg2: memref<8x128xf32, #tpu.memory_space<vmem>>, %arg3: memref<1x128xf32, #tpu.memory_space<vmem>>, %arg4: memref<1x128xf32, #tpu.memory_space<vmem>>, %arg5: memref<128x128xbf16, #tpu.memory_space<vmem>>, %arg6: memref<1x128xf32, #tpu.memory_space<vmem>>, %arg7: memref<8x128xf32, #tpu.memory_space<vmem>>) attributes {dimension_semantics = [#tpu.dimension_semantics<parallel>, #tpu.dimension_semantics<parallel>], iteration_bounds = array<i64: 1, 2>, scalar_prefetch = 0 : i64, scratch_operands = 0 : i64, tpu.core_type = #tpu.core_type<tc>, window_params = [{transform_indices = @transform_0, window_bounds = array<i64: 8, 128>}, {pipeline_mode = #tpu.pipeline_mode<synchronous>, transform_indices = @transform_1, window_bounds = array<i64: 1, 128>}, {pipeline_mode = #tpu.pipeline_mode<synchronous>, transform_indices = @transform_2, window_bounds = array<i64: 1, 128>}, {transform_indices = @transform_3, window_bounds = array<i64: 128, 128>}, {transform_indices = @transform_4, window_bounds = array<i64: 1, 128>}, {transform_indices = @transform_5, window_bounds = array<i64: 8, 128>}]} {
    %c0 = arith.constant 0 : index
    %c0_0 = arith.constant 0 : index
    %0 = vector.load %arg2[%c0, %c0_0] : memref<8x128xf32, #tpu.memory_space<vmem>>, vector<8x128xf32>
    %cst = arith.constant dense<0.000000e+00> : vector<8xf32>
    %1 = vector.multi_reduction <add>, %0, %cst [1] : vector<8x128xf32> to vector<8xf32>
    %2 = vector.shape_cast %1 : vector<8xf32> to vector<8x1xf32>
    %cst_1 = arith.constant 7.812500e-03 : f32
    %3 = vector.broadcast %cst_1 : f32 to vector<8x1xf32>
    %4 = arith.mulf %2, %3 : vector<8x1xf32>
    %5 = vector.broadcast %4 : vector<8x1xf32> to vector<8x128xf32>
    %6 = arith.subf %0, %5 : vector<8x128xf32>
    %7 = arith.mulf %6, %6 : vector<8x128xf32>
    %cst_2 = arith.constant dense<0.000000e+00> : vector<8xf32>
    %8 = vector.multi_reduction <add>, %7, %cst_2 [1] : vector<8x128xf32> to vector<8xf32>
    %9 = vector.shape_cast %8 : vector<8xf32> to vector<8x1xf32>
    %cst_3 = arith.constant 7.812500e-03 : f32
    %10 = vector.broadcast %cst_3 : f32 to vector<8x1xf32>
    %11 = arith.mulf %9, %10 : vector<8x1xf32>
    %cst_4 = arith.constant 9.99999974E-6 : f32
    %12 = vector.broadcast %cst_4 : f32 to vector<8x1xf32>
    %13 = arith.addf %11, %12 : vector<8x1xf32>
    %14 = math.rsqrt %13 : vector<8x1xf32>
    %15 = vector.broadcast %14 : vector<8x1xf32> to vector<8x128xf32>
    %16 = arith.mulf %6, %15 : vector<8x128xf32>
    %c0_5 = arith.constant 0 : index
    %c0_6 = arith.constant 0 : index
    %17 = vector.load %arg3[%c0_5, %c0_6] : memref<1x128xf32, #tpu.memory_space<vmem>>, vector<1x128xf32>
    %18 = vector.broadcast %17 : vector<1x128xf32> to vector<8x128xf32>
    %19 = arith.mulf %16, %18 : vector<8x128xf32>
    %c0_7 = arith.constant 0 : index
    %c0_8 = arith.constant 0 : index
    %20 = vector.load %arg4[%c0_7, %c0_8] : memref<1x128xf32, #tpu.memory_space<vmem>>, vector<1x128xf32>
    %21 = vector.broadcast %20 : vector<1x128xf32> to vector<8x128xf32>
    %22 = arith.addf %19, %21 : vector<8x128xf32>
    %23 = arith.truncf %22 : vector<8x128xf32> to vector<8x128xbf16>
    %c0_9 = arith.constant 0 : index
    %c0_10 = arith.constant 0 : index
    %24 = vector.load %arg5[%c0_9, %c0_10] : memref<128x128xbf16, #tpu.memory_space<vmem>>, vector<128x128xbf16>
    %cst_11 = arith.constant dense<0.000000e+00> : vector<8x128xf32>
    %25 = tpu.matmul %23, %24, %cst_11 {dimension_numbers = #tpu.dot_dimension_numbers<[1], [0], [0], [1], [0, 0, 1, 1], [], []>} : vector<8x128xbf16>, vector<128x128xbf16>, vector<8x128xf32> -> vector<8x128xf32>
    %c0_12 = arith.constant 0 : index
    %c0_13 = arith.constant 0 : index
    %26 = vector.load %arg6[%c0_12, %c0_13] : memref<1x128xf32, #tpu.memory_space<vmem>>, vector<1x128xf32>
    %27 = vector.broadcast %26 : vector<1x128xf32> to vector<8x128xf32>
    %28 = arith.addf %25, %27 : vector<8x128xf32>
    %c0_14 = arith.constant 0 : index
    %c0_15 = arith.constant 0 : index
    %29 = vector.load %arg7[%c0_14, %c0_15] : memref<8x128xf32, #tpu.memory_space<vmem>>, vector<8x128xf32>
    tpu.vector_store %arg7[%c0_14, %c0_15], %28 {strides = array<i32>} : memref<8x128xf32, #tpu.memory_space<vmem>>, vector<8x128xf32>,
    return
  }
  func.func @transform_0(%arg0: i32, %arg1: i32) -> (i32, i32) {
    %c0_i32 = arith.constant 0 : i32
    %c0_i32_0 = arith.constant 0 : i32
    return %arg1, %c0_i32 : i32, i32
  }
  func.func @transform_1(%arg0: i32, %arg1: i32) -> (i32, i32) {
    %c0_i32 = arith.constant 0 : i32
    %c0_i32_0 = arith.constant 0 : i32
    %c0_i32_1 = arith.constant 0 : i32
    return %c0_i32, %c0_i32_0 : i32, i32
  }
  func.func @transform_2(%arg0: i32, %arg1: i32) -> (i32, i32) {
    %c0_i32 = arith.constant 0 : i32
    %c0_i32_0 = arith.constant 0 : i32
    %c0_i32_1 = arith.constant 0 : i32
    return %c0_i32, %c0_i32_0 : i32, i32
  }
  func.func @transform_3(%arg0: i32, %arg1: i32) -> (i32, i32) {
    %c0_i32 = arith.constant 0 : i32
    %c0_i32_0 = arith.constant 0 : i32
    return %c0_i32, %arg0 : i32, i32
  }
  func.func @transform_4(%arg0: i32, %arg1: i32) -> (i32, i32) {
    %c0_i32 = arith.constant 0 : i32
    %c0_i32_0 = arith.constant 0 : i32
    return %c0_i32, %arg0 : i32, i32
  }
  func.func @transform_5(%arg0: i32, %arg1: i32) -> (i32, i32) {
    %c0_i32 = arith.constant 0 : i32
    return %arg1, %arg0 : i32, i32
  }
}

</mosaic_0001>

<llo_original>
// kernel: tpu_custom_call.1
$region0: #{tpu_custom_call.1}
  #allocation0 [shape = 'u32[]', space=smem, size = 0x4, offset = 0x4, fixed_abs, tag = 'smem constant byte address 0x4 - core index']
  #allocation1 [shape = 'u32[72,128]{1,0:T(1,128)}', space=vmem, size = 0x9000, scoped, tag = 'internal scratch']
  %s0 = inlined_call_operand.hbm [shape: f32[16,128], index: 0, kind: input, shape index: {}]
  %s1 = inlined_call_operand.hbm [shape: f32[1,128], index: 1, kind: input, shape index: {}]
  %s2 = inlined_call_operand.vmem [shape: f32[1,128], index: 2, kind: input, shape index: {}]
  %s3 = inlined_call_operand.hbm [shape: bf16[128,128], index: 3, kind: input, shape index: {}]
  %s4 = inlined_call_operand.vmem [shape: f32[1,128], index: 4, kind: input, shape index: {}]
  %s5 = inlined_call_operand.hbm [shape: f32[16,128], index: 5, kind: output, shape index: {}]
  %s6 = sld [smem:[#allocation0]]
  $region65: #{tpu_custom_call.1} parent=0
    _
  %s8 = ssub.s32 1, %s6
  %s9 = scalar_select 0, %s8, %s6
  $region1: #{tpu_custom_call.1} parent=0
    #allocation2 [shape = 'u8[8192]{0}', space=vmem, size = 0x2000, scoped, tag = 'input window, operand 0']
    #allocation3 [shape = 's32[2]{0}', space=sflag, size = 0x8, scoped, tag = 'scoped memory for tpu_custom_call.1']
    #allocation4 [shape = 's32[2]{0}', space=sflag, size = 0x8, scoped, tag = 'scoped memory for tpu_custom_call.1']
    #allocation5 [shape = 'u8[512]{0}', space=vmem, size = 0x400, scoped, tag = 'input window, operand 1, single buffered']
    #allocation6 [shape = 's32[1]{0}', space=sflag, size = 0x4, scoped, tag = 'scoped memory for tpu_custom_call.1']
    #allocation7 [shape = 'u8[32768]{0}', space=vmem, size = 0x8000, scoped, tag = 'input window, operand 3, single buffered']
    #allocation8 [shape = 'u8[8192]{0}', space=vmem, size = 0x2000, scoped, tag = 'output window, operand 0']
    %10 = vsyncpa [#allocation3], 0
    %s11 = scalar_lea.sflag [#allocation3], 1
    %12 = vsyncpa %s11, 0
    %13 = vsyncpa [#allocation6], 0
    %14 = vsyncpa [#allocation4], 0
    %s15 = scalar_lea.sflag [#allocation4], 1
    %16 = vsyncpa %s15, 0
    loop: start=0, step=1, limit=4
    $region2: #{tpu_custom_call.1} parent=1 // loop_pre_header
      _
    $region3: #{tpu_custom_call.1} parent=1 // loop_header
      %s18 = sphi 0, %s22
      %p19 = scmp.ge.s32.totalorder %s18, 4
      %s25 = sphi 0, %s37
      %s26 = sphi 0, %s33
      %s27 = sphi 0, %s25
      %s28 = sphi 0, %s26
      %s29 = sphi 0, %s27
      %s30 = sphi 0, %s28
      %s40 = sphi 0, %s42
      %s43 = sphi 0, %s40
      %s44 = sphi 0, %s43
      %s60 = sphi 0, %s44
      %s64 = sphi 0, %s64
      %s66 = sphi 0, %s64
      %s67 = sphi 0, %s66
      %s81 = sphi 0, %s67
      %s85 = sphi 0, %s85
      %s87 = sphi 0, %s85
      %s88 = sphi 0, %s87
      %s102 = sphi 0, %s88
      %s108 = sphi 0, %s110
      %s111 = sphi 0, %s108
      %s112 = sphi 0, %s111
      %s128 = sphi 0, %s112
      %s134 = sphi 0, %s136
      %s137 = sphi 0, %s134
      %s138 = sphi 0, %s137
      %s154 = sphi 0, %s138
      %s162 = sphi 0, %s164
      %s165 = sphi 0, %s162
      %s166 = sphi 0, %s165
      %s182 = sphi 0, %s166
    $region4: #{tpu_custom_call.1} parent=1 // loop_header_branch
      %21 = sbr.rel (%p19) target = $region8
    $region5: #{tpu_custom_call.1} parent=1 // loop_body
      %s23 = ssub.s32 %s18, 1
      %s24 = ssub.s32 %s18, 2
      %s31 = sadd.s32 1, %s26
      %p32 = scmp.ge.s32.totalorder %s31, 2
      %s33 = scalar_select %p32, 0, %s31
      %s34 = sadd.s32 1, %s25
      %s35 = scalar_select %p32, %s34, %s25
      %p36 = scmp.ge.s32.totalorder %s35, 1
      %s37 = scalar_select %p36, 0, %s35
      %s38 = ssub.s32 %s26, %s33
      %p39 = scmp.eq.s32.totalorder %s38, 0
      %s41 = sadd.s32 %s40, 1
      %s42 = scalar_select %p39, %s40, %s41
      %p45 = pneg %p39
      %p46 = scmp.eq.s32.totalorder %s18, 1
      %p47 = por %p45, %p46
      %p48 = scmp.ne.s32.totalorder %s40, %s43
      %p49 = scmp.eq.s32.totalorder %s18, 0
      %p50 = por %p48, %p49
      %p51 = scmp.ne.s32.totalorder %s40, %s43
      %p52 = scmp.eq.s32.totalorder %s23, 1
      %p53 = por %p51, %p52
      %p54 = scmp.ne.s32.totalorder %s43, %s44
      %p55 = scmp.eq.s32.totalorder %s23, 0
      %p56 = por %p54, %p55
      %p57 = scmp.ne.s32.totalorder %s43, %s44
      %p58 = scmp.eq.s32.totalorder %s24, 1
      %p59 = por %p57, %p58
      %p61 = scmp.ne.s32.totalorder %s44, %s60
      %p62 = scmp.eq.s32.totalorder %s24, 0
      %p63 = por %p61, %p62
      %s65 = sadd.s32 %s64, 1
      %p68 = scmp.eq.s32.totalorder %s18, 1
      %p69 = scmp.ne.s32.totalorder %s64, %s66
      %p70 = scmp.eq.s32.totalorder %s18, 0
      %p71 = por %p69, %p70
      %p72 = scmp.ne.s32.totalorder %s64, %s66
      %p73 = scmp.eq.s32.totalorder %s23, 1
      %p74 = por %p72, %p73
      %p75 = scmp.ne.s32.totalorder %s66, %s67
      %p76 = scmp.eq.s32.totalorder %s23, 0
      %p77 = por %p75, %p76
      %p78 = scmp.ne.s32.totalorder %s66, %s67
      %p79 = scmp.eq.s32.totalorder %s24, 1
      %p80 = por %p78, %p79
      %p82 = scmp.ne.s32.totalorder %s67, %s81
      %p83 = scmp.eq.s32.totalorder %s24, 0
      %p84 = por %p82, %p83
      %s86 = sadd.s32 %s85, 1
      %p89 = scmp.eq.s32.totalorder %s18, 1
      %p90 = scmp.ne.s32.totalorder %s85, %s87
      %p91 = scmp.eq.s32.totalorder %s18, 0
      %p92 = por %p90, %p91
      %p93 = scmp.ne.s32.totalorder %s85, %s87
      %p94 = scmp.eq.s32.totalorder %s23, 1
      %p95 = por %p93, %p94
      %p96 = scmp.ne.s32.totalorder %s87, %s88
      %p97 = scmp.eq.s32.totalorder %s23, 0
      %p98 = por %p96, %p97
      %p99 = scmp.ne.s32.totalorder %s87, %s88
      %p100 = scmp.eq.s32.totalorder %s24, 1
      %p101 = por %p99, %p100
      %p103 = scmp.ne.s32.totalorder %s88, %s102
      %p104 = scmp.eq.s32.totalorder %s24, 0
      %p105 = por %p103, %p104
      %s106 = ssub.s32 %s25, %s37
      %p107 = scmp.eq.s32.totalorder %s106, 0
      %s109 = sadd.s32 %s108, 1
      %s110 = scalar_select %p107, %s108, %s109
      %p113 = pneg %p107
      %p114 = scmp.eq.s32.totalorder %s18, 1
      %p115 = por %p113, %p114
      %p116 = scmp.ne.s32.totalorder %s108, %s111
      %p117 = scmp.eq.s32.totalorder %s18, 0
      %p118 = por %p116, %p117
      %p119 = scmp.ne.s32.totalorder %s108, %s111
      %p120 = scmp.eq.s32.totalorder %s23, 1
      %p121 = por %p119, %p120
      %p122 = scmp.ne.s32.totalorder %s111, %s112
      %p123 = scmp.eq.s32.totalorder %s23, 0
      %p124 = por %p122, %p123
      %p125 = scmp.ne.s32.totalorder %s111, %s112
      %p126 = scmp.eq.s32.totalorder %s24, 1
      %p127 = por %p125, %p126
      %p129 = scmp.ne.s32.totalorder %s112, %s128
      %p130 = scmp.eq.s32.totalorder %s24, 0
      %p131 = por %p129, %p130
      %s132 = ssub.s32 %s25, %s37
      %p133 = scmp.eq.s32.totalorder %s132, 0
      %s135 = sadd.s32 %s134, 1
      %s136 = scalar_select %p133, %s134, %s135
      %p139 = pneg %p133
      %p140 = scmp.eq.s32.totalorder %s18, 1
      %p141 = por %p139, %p140
      %p142 = scmp.ne.s32.totalorder %s134, %s137
      %p143 = scmp.eq.s32.totalorder %s18, 0
      %p144 = por %p142, %p143
      %p145 = scmp.ne.s32.totalorder %s134, %s137
      %p146 = scmp.eq.s32.totalorder %s23, 1
      %p147 = por %p145, %p146
      %p148 = scmp.ne.s32.totalorder %s137, %s138
      %p149 = scmp.eq.s32.totalorder %s23, 0
      %p150 = por %p148, %p149
      %p151 = scmp.ne.s32.totalorder %s137, %s138
      %p152 = scmp.eq.s32.totalorder %s24, 1
      %p153 = por %p151, %p152
      %p155 = scmp.ne.s32.totalorder %s138, %s154
      %p156 = scmp.eq.s32.totalorder %s24, 0
      %p157 = por %p155, %p156
      %s158 = ssub.s32 %s26, %s33
      %s159 = ssub.s32 %s25, %s37
      %s160 = sor.u32 %s158, %s159
      %p161 = scmp.eq.s32.totalorder %s160, 0
      %s163 = sadd.s32 %s162, 1
      %s164 = scalar_select %p161, %s162, %s163
      %p167 = pneg %p161
      %p168 = scmp.eq.s32.totalorder %s18, 1
      %p169 = por %p167, %p168
      %p170 = scmp.ne.s32.totalorder %s162, %s165
      %p171 = scmp.eq.s32.totalorder %s18, 0
      %p172 = por %p170, %p171
      %p173 = scmp.ne.s32.totalorder %s162, %s165
      %p174 = scmp.eq.s32.totalorder %s23, 1
      %p175 = por %p173, %p174
      %p176 = scmp.ne.s32.totalorder %s165, %s166
      %p177 = scmp.eq.s32.totalorder %s23, 0
      %p178 = por %p176, %p177
      %p179 = scmp.ne.s32.totalorder %s165, %s166
      %p180 = scmp.eq.s32.totalorder %s24, 1
      %p181 = por %p179, %p180
      %p183 = scmp.ne.s32.totalorder %s166, %s182
      %p184 = scmp.eq.s32.totalorder %s24, 0
      %p185 = por %p183, %p184
      %p186 = scmp.le.s32.totalorder 1, %s18
      %p187 = scmp.lt.s32.totalorder %s18, 3
      %p188 = pnand %p186, %p187
      %p189 = pneg %p188
      // Predicated region
      $region9: #{tpu_custom_call.1} parent=5 // pred_check
        _
      $region10: #{tpu_custom_call.1} parent=5 // pred_check_branch
        %191 = sbr.rel (%p188) target = $region12
      $region11: #{tpu_custom_call.1} parent=5 // pred_region
        %s192 = ssub.s32 %s18, 1
        // Predicated region
        $region13: #{tpu_custom_call.1} parent=11 // pred_check
          %p193 = pneg %p77
        $region14: #{tpu_custom_call.1} parent=11 // pred_check_branch
          %195 = sbr.rel (%p193) target = $region16
        $region15: #{tpu_custom_call.1} parent=11 // pred_region
          %197 = vsyncadd [#allocation6], 0
          %s199 = sshll.u32 %s1, 4
          %s200 = int_to_ptr.hbm [resolvable:$true] %s199
          %s201 = sshll.u32 [#allocation5], 4
          %s202 = int_to_ptr.vmem [resolvable:$true] %s201
          %204 = dma.hbm_to_vmem [thread:$0]  %s200, 16, %s202, [#allocation6]
        $region16: #{tpu_custom_call.1} parent=11 // pred_fallthru
          _
        // Predicated region
        $region17: #{tpu_custom_call.1} parent=11 // pred_check
          %p205 = pneg %p98
        $region18: #{tpu_custom_call.1} parent=11 // pred_check_branch
          %207 = sbr.rel (%p205) target = $region20
        $region19: #{tpu_custom_call.1} parent=11 // pred_region
          _
        $region20: #{tpu_custom_call.1} parent=11 // pred_fallthru
          _
        // Predicated region
        $region21: #{tpu_custom_call.1} parent=11 // pred_check
          %p208 = pneg %p124
        $region22: #{tpu_custom_call.1} parent=11 // pred_check_branch
          %210 = sbr.rel (%p208) target = $region24
        $region23: #{tpu_custom_call.1} parent=11 // pred_region
          %212 = vsyncadd [#allocation6], 0
          %s213 = smul.addr %s27, 4
          %s214 = scalar_lea.hbm %s3, %s213
          %s215 = sshll.u32 %s214, 4
          %s216 = int_to_ptr.hbm [resolvable:$true] %s215
          %s217 = sshll.u32 [#allocation7], 4
          %s218 = int_to_ptr.vmem [resolvable:$true] %s217
          %223 = dma.hbm_to_vmem [thread:$0]  %s216, 1024, %s218, [#allocation6], 64, 64, 4
        $region24: #{tpu_custom_call.1} parent=11 // pred_fallthru
          _
        // Predicated region
        $region25: #{tpu_custom_call.1} parent=11 // pred_check
          %p224 = pneg %p150
        $region26: #{tpu_custom_call.1} parent=11 // pred_check_branch
          %226 = sbr.rel (%p224) target = $region28
        $region27: #{tpu_custom_call.1} parent=11 // pred_region
          %p227 = scmp.lt.s32.totalorder %s27, 0
          %s228 = scalar_select %p227, %s27, 0
          %s229 = scalar_lea.vmem %s4, %s228
        $region28: #{tpu_custom_call.1} parent=11 // pred_fallthru
          _
      $region12: #{tpu_custom_call.1} parent=5 // pred_fallthru
        _
      %p230 = scmp.lt.s32.totalorder %s18, 2
      // Predicated region
      $region29: #{tpu_custom_call.1} parent=5 // pred_check
        %p231 = pneg %p230
      $region30: #{tpu_custom_call.1} parent=5 // pred_check_branch
        %233 = sbr.rel (%p231) target = $region32
      $region31: #{tpu_custom_call.1} parent=5 // pred_region
        // Predicated region
        $region33: #{tpu_custom_call.1} parent=31 // pred_check
          %p234 = pneg %p50
        $region34: #{tpu_custom_call.1} parent=31 // pred_check_branch
          %236 = sbr.rel (%p234) target = $region36
        $region35: #{tpu_custom_call.1} parent=31 // pred_region
          %s237 = sand.u32 %s40, 1
          %s238 = scalar_lea.sflag [#allocation3], %s237
          %s239 = sand.u32 %s40, 1
          %s240 = smul.addr %s239, 8
          %s241 = scalar_lea.vmem [#allocation2], %s240
          %243 = vsyncadd %s238, 0
          %s244 = smul.addr %s26, 8
          %s245 = scalar_lea.hbm %s0, %s244
          %s247 = sshll.u32 %s245, 4
          %s248 = int_to_ptr.hbm [resolvable:$true] %s247
          %s249 = sshll.u32 %s241, 4
          %s250 = int_to_ptr.vmem [resolvable:$true] %s249
          %252 = dma.hbm_to_vmem [thread:$0]  %s248, 128, %s250, %s238
        $region36: #{tpu_custom_call.1} parent=31 // pred_fallthru
          _
      $region32: #{tpu_custom_call.1} parent=5 // pred_fallthru
        _
      %p253 = scmp.le.s32.totalorder 1, %s18
      %p254 = scmp.lt.s32.totalorder %s18, 3
      %p255 = pnand %p253, %p254
      %p256 = pneg %p255
      // Predicated region
      $region37: #{tpu_custom_call.1} parent=5 // pred_check
        _
      $region38: #{tpu_custom_call.1} parent=5 // pred_check_branch
        %258 = sbr.rel (%p255) target = $region40
      $region39: #{tpu_custom_call.1} parent=5 // pred_region
        %s259 = ssub.s32 %s18, 1
        %s260 = sand.u32 %s43, 1
        %s261 = scalar_lea.sflag [#allocation3], %s260
        %s262 = sand.u32 %s43, 1
        %s263 = smul.addr %s262, 8
        %s264 = scalar_lea.vmem [#allocation2], %s263
        // Predicated region
        $region41: #{tpu_custom_call.1} parent=39 // pred_check
          %p265 = pneg %p56
        $region42: #{tpu_custom_call.1} parent=39 // pred_check_branch
          %267 = sbr.rel (%p265) target = $region44
        $region43: #{tpu_custom_call.1} parent=39 // pred_region
          %269 = dma.done %s261, 128
        $region44: #{tpu_custom_call.1} parent=39 // pred_fallthru
          _
        // Predicated region
        $region45: #{tpu_custom_call.1} parent=39 // pred_check
          %p270 = pneg %p77
        $region46: #{tpu_custom_call.1} parent=39 // pred_check_branch
          %272 = sbr.rel (%p270) target = $region48
        $region47: #{tpu_custom_call.1} parent=39 // pred_region
          %274 = dma.done [#allocation6], 16
        $region48: #{tpu_custom_call.1} parent=39 // pred_fallthru
          _
        // Predicated region
        $region49: #{tpu_custom_call.1} parent=39 // pred_check
          %p275 = pneg %p124
        $region50: #{tpu_custom_call.1} parent=39 // pred_check_branch
          %277 = sbr.rel (%p275) target = $region52
        $region51: #{tpu_custom_call.1} parent=39 // pred_region
          %279 = dma.done [#allocation6], 1024
        $region52: #{tpu_custom_call.1} parent=39 // pred_fallthru
          _
        %s280 = sand.u32 %s43, 1
        %s281 = scalar_lea.sflag [#allocation3], %s280
        %s282 = sand.u32 %s43, 1
        %s283 = smul.addr %s282, 8
        %s284 = scalar_lea.vmem [#allocation2], %s283
        %p285 = pneg %p56
        %p286 = pneg %p53
        %p287 = pneg %p77
        %p288 = pneg %p74
        %p289 = pneg %p98
        %p290 = pneg %p95
        %p291 = pneg %p124
        %p292 = pneg %p121
        %p293 = scmp.lt.s32.totalorder %s27, 0
        %s294 = scalar_select %p293, %s27, 0
        %s295 = scalar_lea.vmem %s4, %s294
        %p296 = pneg %p150
        %p297 = pneg %p147
        %p298 = pneg %p178
        %p299 = pneg %p175
        %s300 = sand.u32 %s165, 1
        %s301 = scalar_lea.sflag [#allocation4], %s300
        %s302 = sand.u32 %s165, 1
        %s303 = smul.addr %s302, 8
        %s304 = scalar_lea.vmem [#allocation8], %s303
        %p305 = scmp.lt.s32.totalorder %s27, 0
        %s306 = scalar_select %p305, %s27, 0
        %s307 = scalar_lea.vmem %s4, %s306
        %v308 = vld [vmem:[%s264] sm:$0xff]
        %309 = vadd.xlane.f32.xlu0 %v308
        %v310 = vpop.xlane.xlu0 %309
        %v311 = vmul.f32 %v310, 0.0078125
        %v312 = vsub.f32 %v308, %v311
        %v313 = vmul.f32 %v312, %v312
        %314 = vadd.xlane.f32.xlu0 %v313
        %v315 = vpop.xlane.xlu0 %314
        %v316 = vmul.f32 %v315, 0.0078125
        %v317 = vadd.f32 %v316, 1e-05
        %v318 = vrsqrt.pop %v317
        %v319 = vmul.f32 %v318, %v317
        %v320 = vmul.f32 %v319, %v318
        %v321 = vmul.f32 0.5, %v320
        %v322 = vsub.f32 1.5, %v321
        %v323 = vmul.f32 %v318, %v322
        %vm324 = vweird.f32 %v317
        %vm325 = vweird.f32 %v318
        %vm326 = vmor %vm324, %vm325
        %v327 = vsel %vm326, %v318, %v323
        %v328 = vmul.f32 %v312, %v327
        %v329 = vld [vmem:[#allocation5] sm:$0x1]
        %v331 = vperm.slane %v329, 0
        %v333 = vmul.f32 %v328, %v331
        %v334 = vld [vmem:[%s2] sm:$0x1]
        %v336 = vperm.slane %v334, 0
        %v338 = vadd.f32 %v333, %v336
        %v339 = vpack.c.bf16 %v338, %v338
        %v340 = vld [vmem:[#allocation7] sm:$0xf]
        %v341 = vld [vmem:[#allocation7 + $0x4] sm:$0xf]
        %v342 = vld [vmem:[#allocation7 + $0x8] sm:$0xf]
        %v343 = vld [vmem:[#allocation7 + $0xc] sm:$0xf]
        %v344 = vld [vmem:[#allocation7 + $0x10] sm:$0xf]
        %v345 = vld [vmem:[#allocation7 + $0x14] sm:$0xf]
        %v346 = vld [vmem:[#allocation7 + $0x18] sm:$0xf]
        %v347 = vld [vmem:[#allocation7 + $0x1c] sm:$0xf]
        %v348 = vld [vmem:[#allocation7 + $0x20] sm:$0xf]
        %v349 = vld [vmem:[#allocation7 + $0x24] sm:$0xf]
        %v350 = vld [vmem:[#allocation7 + $0x28] sm:$0xf]
        %v351 = vld [vmem:[#allocation7 + $0x2c] sm:$0xf]
        %v352 = vld [vmem:[#allocation7 + $0x30] sm:$0xf]
        %v353 = vld [vmem:[#allocation7 + $0x34] sm:$0xf]
        %v354 = vld [vmem:[#allocation7 + $0x38] sm:$0xf]
        %v355 = vld [vmem:[#allocation7 + $0x3c] sm:$0xf]
        %v356 = vld [vmem:[%s307] sm:$0x1]
        %v358 = vperm.slane %v356, 0
        %v376 = vunpack.c.l.b16 %v340
        %v377 = vunpack.c.l.b16 %v341
        %v378 = vunpack.c.l.b16 %v342
        %v379 = vunpack.c.l.b16 %v343
        %v380 = vunpack.c.l.b16 %v344
        %v381 = vunpack.c.l.b16 %v345
        %v382 = vunpack.c.l.b16 %v346
        %v383 = vunpack.c.l.b16 %v347
        %v384 = vunpack.c.l.b16 %v348
        %v385 = vunpack.c.l.b16 %v349
        %v386 = vunpack.c.l.b16 %v350
        %v387 = vunpack.c.l.b16 %v351
        %v388 = vunpack.c.l.b16 %v352
        %v389 = vunpack.c.l.b16 %v353
        %v390 = vunpack.c.l.b16 %v354
        %v391 = vunpack.c.l.b16 %v355
        %v392 = vpack.c.b16 %v377, %v376
        %v393 = vpack.c.b16 %v379, %v378
        %v394 = vpack.c.b16 %v381, %v380
        %v395 = vpack.c.b16 %v383, %v382
        %v396 = vpack.c.b16 %v385, %v384
        %v397 = vpack.c.b16 %v387, %v386
        %v398 = vpack.c.b16 %v389, %v388
        %v399 = vpack.c.b16 %v391, %v390
        %408 = vmatpush.bf16.msra.mxu0 %v399
        %409 = vmatpush.bf16.msra.mxu0 %v398
        %410 = vmatpush.bf16.msra.mxu0 %v397
        %411 = vmatpush.bf16.msra.mxu0 %v396
        %412 = vmatpush.bf16.msra.mxu0 %v395
        %413 = vmatpush.bf16.msra.mxu0 %v394
        %414 = vmatpush.bf16.msra.mxu0 %v393
        %415 = vmatpush.bf16.msra.mxu0 %v392
        %416 = vmatmul.bf16.gmra.mxu0 %v339
        %v417 = vpop.f32.mrf.mxu0
        %v418 = vadd.f32 %v358, %v417
        %v419 = vpop.f32.mrf.mxu0
        %420 = vdwg.mxu0
        %421 = vst [vmem:[%s304] sm:$0xff] %v418
        %s422 = sand.u32 %s165, 1
        %s423 = scalar_lea.sflag [#allocation4], %s422
        %s424 = sand.u32 %s165, 1
        %s425 = smul.addr %s424, 8
        %s426 = scalar_lea.vmem [#allocation8], %s425
        // Predicated region
        $region53: #{tpu_custom_call.1} parent=39 // pred_check
          %p427 = pneg %p175
        $region54: #{tpu_custom_call.1} parent=39 // pred_check_branch
          %429 = sbr.rel (%p427) target = $region56
        $region55: #{tpu_custom_call.1} parent=39 // pred_region
          %431 = vsyncadd %s423, 0
          %s432 = sadd.s32 %s27, %s28
          %s433 = smul.addr %s432, 8
          %s434 = scalar_lea.hbm %s5, %s433
          %s436 = sshll.u32 %s426, 4
          %s437 = int_to_ptr.vmem [resolvable:$true] %s436
          %s438 = sshll.u32 %s434, 4
          %s439 = int_to_ptr.hbm [resolvable:$true] %s438
          %441 = dma.vmem_to_hbm [thread:$0]  %s437, 128, %s439, %s423
        $region56: #{tpu_custom_call.1} parent=39 // pred_fallthru
          _
      $region40: #{tpu_custom_call.1} parent=5 // pred_fallthru
        _
      %p442 = scmp.le.s32.totalorder 2, %s18
      // Predicated region
      $region57: #{tpu_custom_call.1} parent=5 // pred_check
        %p443 = pneg %p442
      $region58: #{tpu_custom_call.1} parent=5 // pred_check_branch
        %445 = sbr.rel (%p443) target = $region60
      $region59: #{tpu_custom_call.1} parent=5 // pred_region
        %s446 = ssub.s32 %s18, 2
        // Predicated region
        $region61: #{tpu_custom_call.1} parent=59 // pred_check
          %p447 = pneg %p181
        $region62: #{tpu_custom_call.1} parent=59 // pred_check_branch
          %449 = sbr.rel (%p447) target = $region64
        $region63: #{tpu_custom_call.1} parent=59 // pred_region
          %s450 = sand.u32 %s166, 1
          %s451 = scalar_lea.sflag [#allocation4], %s450
          %s452 = sand.u32 %s166, 1
          %s453 = smul.addr %s452, 8
          %s454 = scalar_lea.vmem [#allocation8], %s453
          %456 = dma.done %s451, 128
        $region64: #{tpu_custom_call.1} parent=59 // pred_fallthru
          _
      $region60: #{tpu_custom_call.1} parent=5 // pred_fallthru
        _
    $region6: #{tpu_custom_call.1} parent=1 // loop_footer
      %s22 = sadd.s32 1, %s18
    $region7: #{tpu_custom_call.1} parent=1 // loop_footer_branch
      %17 = sbr.rel target = $region3
    $region8: #{tpu_custom_call.1} parent=1 // loop_exit
      _
    %457 = vsyncpa [#allocation3], 1
    %s458 = scalar_lea.sflag [#allocation3], 1
    %459 = vsyncpa %s458, 1
    %460 = vsyncpa [#allocation6], 1
    %461 = vsyncpa [#allocation4], 1
    %s462 = scalar_lea.sflag [#allocation4], 1
    %463 = vsyncpa %s462, 1

</llo_original>
